<compile_context>
chip_gen: v5e
topology: v5e:2x2
jax: 0.10.0
libtpu: 0.0.40
codegen_flags: <defaults>
</compile_context>

<pallas_src>
import math
from functools import partial

import jax
import jax.numpy as jnp
from jax.experimental import pallas as pl
from jax.experimental.pallas import tpu as pltpu


def make_pe_table(d_model: int, max_len: int = 5000,
                  dtype=jnp.float32) -> jnp.ndarray:
    """Builds the (max_len, d_model) positional-encoding buffer.

    The PyTorch module stores this as (max_len, 1, d_model); the singleton
    batch axis is re-introduced by broadcasting inside the kernel/wrapper.
    """
    position = jnp.arange(0, max_len, dtype=jnp.float32)[:, None]          # (L, 1)
    div_term = jnp.exp(
        jnp.arange(0, d_model, 2, dtype=jnp.float32)
        * (-math.log(10000.0) / d_model)
    )                                                                        # (D/2,)
    angles = position * div_term                                             # (L, D/2)
    pe = jnp.zeros((max_len, d_model), dtype=jnp.float32)
    pe = pe.at[:, 0::2].set(jnp.sin(angles))
    pe = pe.at[:, 1::2].set(jnp.cos(angles))
    return pe.astype(dtype)


def _scale_add_pe_kernel(x_ref, pe_ref, o_ref, *, batch: int, scale: float):
    # x_ref / o_ref: (ts, B*D) lane-dense; pe_ref: (ts, D).
    pe = pe_ref[...]
    if batch > 1:
        # Replicate pe along the lane axis so row layout matches x.reshape(S, B*D).
        pe = jnp.tile(pe, (1, batch))
    x = x_ref[...]
    if scale != 1.0:
        x = x * scale
    o_ref[...] = (x + pe).astype(o_ref.dtype)


def _choose_seq_tile(S: int, row_bytes: int,
                     target_block_bytes: int = 2 << 20,
                     min_grid: int = 2) -> int:
    """Pick a sequence tile: multiple of 8 dividing S, block <= ~2 MiB,
    preferring >=2 grid steps so the pipeline (and v7x megacore) has work."""
    if S % 8 != 0:
        return S  # single full block (block dim == array dim is always legal)
    divisors = [d for d in range(8, S + 1, 8) if S % d == 0]
    fits = [d for d in divisors if d * row_bytes <= target_block_bytes]
    if not fits:
        return divisors[0]
    pipelined = [d for d in fits if S // d >= min_grid]
    return max(pipelined) if pipelined else max(fits)


def positional_encoding_forward(x: jnp.ndarray, pe: jnp.ndarray, *,
                                scale: float = 1.0,
                                seq_tile: int | None = None,
                                in_place: bool = False) -> jnp.ndarray:
    """Computes x * scale + pe[:S] (broadcast over the middle axis).

    x:  (S, B, D), pe: (max_len, D).  scale=1.0 matches PositionalEncoding
    exactly; scale=sqrt(d_model) fuses the embedding scale from the
    Encoder/Decoder forward into the same memory pass.
    """
    S, B, D = x.shape
    max_len, d_model = pe.shape
    if d_model != D:
        raise ValueError(f"d_model mismatch: x has {D}, pe has {d_model}")
    if S > max_len:
        raise ValueError(f"sequence length {S} exceeds pe max_len {max_len}")

    pe = pe.astype(x.dtype)              # no-op if already matching (e.g. bf16 end-to-end)
    x2 = x.reshape(S, B * D)             # free contiguous view -> lane-dense blocks

    row_bytes = B * D * jnp.dtype(x.dtype).itemsize
    ts = seq_tile if seq_tile is not None else _choose_seq_tile(S, row_bytes)
    if S % ts != 0:
        raise ValueError(f"seq length {S} not divisible by seq tile {ts}")
    grid = (S // ts,)

    kernel = partial(_scale_add_pe_kernel, batch=B, scale=float(scale))

    out2 = pl.pallas_call(
        kernel,
        out_shape=jax.ShapeDtypeStruct((S, B * D), x.dtype),
        grid_spec=pltpu.PrefetchScalarGridSpec(
            num_scalar_prefetch=0,
            grid=grid,
            in_specs=[
                pl.BlockSpec((ts, B * D), lambda i: (i, 0)),   # x slab (lane-dense)
                pl.BlockSpec((ts, D), lambda i: (i, 0)),       # pe rows (1/B the bytes)
            ],
            out_specs=pl.BlockSpec((ts, B * D), lambda i: (i, 0)),
        ),
        compiler_params=pltpu.CompilerParams(
            dimension_semantics=("parallel",)),   # megacore-shard seq on v7x
        # Blocks are <= ~2 MiB so double-buffering fits the default scoped VMEM
        # on v5e (16 MiB) / v6e / v7x (32 MiB) without vmem_limit_bytes.
        input_output_aliases={0: 0} if in_place else {},
    )(x2, pe)
    return out2.reshape(S, B, D)


if __name__ == "__main__":
    # Small stand-ins for the spec's seq=20/15, batch=64, d_model=512.
    S, B, D = 16, 4, 128
    MAX_LEN = 64
    VOCAB = 1000

    key = jax.random.PRNGKey(0)
    k_x, k_tok, k_emb = jax.random.split(key, 3)

    pe = make_pe_table(D, max_len=MAX_LEN)     # (max_len, D)
    pe3 = pe[:, None, :]                       # PyTorch-module view (max_len, 1, D)

    # 1) PositionalEncoding.forward: x + pe[:S]
    x = jax.random.normal(k_x, (S, B, D), dtype=jnp.float32)
    out = jax.block_until_ready(positional_encoding_forward(x, pe))
    ref = x + pe3[:S]
    assert out.shape == (S, B, D)
    assert jnp.allclose(out, ref, atol=1e-6), "PE add mismatch vs reference"

    # 2) Fused Encoder/Decoder front end: embedding(x) * sqrt(d_model) + pe[:S]
    #    (embedding gather stays in XLA; the sqrt(d_model) scale is fused into
    #     the PE kernel so the broadcast add costs no extra pass over x)
    tokens = jax.random.randint(k_tok, (S, B), 1, VOCAB)
    emb_table = jax.random.normal(k_emb, (VOCAB, D), dtype=jnp.float32) * 0.02
    emb = jnp.take(emb_table, tokens, axis=0)                       # (S, B, D)
    out2 = jax.block_until_ready(
        positional_encoding_forward(emb, pe, scale=math.sqrt(D)))
    ref2 = emb * math.sqrt(D) + pe3[:S]
    assert jnp.allclose(out2, ref2, atol=1e-5), "fused scale+PE mismatch"

    print("KERNEL_OK")
</pallas_src>

<mosaic_0001>
module attributes {stable_mosaic.version = 11 : i64} {
  func.func @_scale_add_pe_kernel(%arg0: i32, %arg1: memref<8x512xf32, #tpu.memory_space<vmem>>, %arg2: memref<8x128xf32, #tpu.memory_space<vmem>>, %arg3: memref<8x512xf32, #tpu.memory_space<vmem>>) attributes {dimension_semantics = [#tpu.dimension_semantics<parallel>], iteration_bounds = array<i64: 2>, scalar_prefetch = 0 : i64, scratch_operands = 0 : i64, tpu.core_type = #tpu.core_type<tc>, window_params = [{transform_indices = @transform_0, window_bounds = array<i64: 8, 512>}, {transform_indices = @transform_1, window_bounds = array<i64: 8, 128>}, {transform_indices = @transform_2, window_bounds = array<i64: 8, 512>}]} {
    %c0 = arith.constant 0 : index
    %c0_0 = arith.constant 0 : index
    %0 = vector.load %arg2[%c0, %c0_0] : memref<8x128xf32, #tpu.memory_space<vmem>>, vector<8x128xf32>
    %1 = tpu.concatenate %0, %0, %0, %0 in 1 : vector<8x128xf32>, vector<8x128xf32>, vector<8x128xf32>, vector<8x128xf32> -> vector<8x512xf32>
    %c0_1 = arith.constant 0 : index
    %c0_2 = arith.constant 0 : index
    %2 = vector.load %arg1[%c0_1, %c0_2] : memref<8x512xf32, #tpu.memory_space<vmem>>, vector<8x512xf32>
    %3 = arith.addf %2, %1 : vector<8x512xf32>
    %c0_3 = arith.constant 0 : index
    %c0_4 = arith.constant 0 : index
    %4 = vector.load %arg3[%c0_3, %c0_4] : memref<8x512xf32, #tpu.memory_space<vmem>>, vector<8x512xf32>
    tpu.vector_store %arg3[%c0_3, %c0_4], %3 {strides = array<i32>} : memref<8x512xf32, #tpu.memory_space<vmem>>, vector<8x512xf32>,
    return
  }
  func.func @transform_0(%arg0: i32) -> (i32, i32) {
    %c0_i32 = arith.constant 0 : i32
    %c0_i32_0 = arith.constant 0 : i32
    return %arg0, %c0_i32 : i32, i32
  }
  func.func @transform_1(%arg0: i32) -> (i32, i32) {
    %c0_i32 = arith.constant 0 : i32
    %c0_i32_0 = arith.constant 0 : i32
    return %arg0, %c0_i32 : i32, i32
  }
  func.func @transform_2(%arg0: i32) -> (i32, i32) {
    %c0_i32 = arith.constant 0 : i32
    %c0_i32_0 = arith.constant 0 : i32
    return %arg0, %c0_i32 : i32, i32
  }
}

</mosaic_0001>

<llo_original>
// kernel: tpu_custom_call.1
$region0: #{tpu_custom_call.1}
  #allocation0 [shape = 'u32[]', space=smem, size = 0x4, offset = 0x4, fixed_abs, tag = 'smem constant byte address 0x4 - core index']
  #allocation1 [shape = 'u32[72,128]{1,0:T(1,128)}', space=vmem, size = 0x9000, scoped, tag = 'internal scratch']
  %s0 = inlined_call_operand.hbm [shape: f32[16,512], index: 0, kind: input, shape index: {}]
  %s1 = inlined_call_operand.hbm [shape: f32[64,128], index: 1, kind: input, shape index: {}]
  %s2 = inlined_call_operand.hbm [shape: f32[16,512], index: 2, kind: output, shape index: {}]
  %s3 = sld [smem:[#allocation0]]
  $region49: #{tpu_custom_call.1} parent=0
    _
  %s5 = ssub.s32 1, %s3
  %s6 = scalar_select 0, %s5, %s3
  $region1: #{tpu_custom_call.1} parent=0
    #allocation2 [shape = 'u8[32768]{0}', space=vmem, size = 0x8000, scoped, tag = 'input window, operand 0']
    #allocation3 [shape = 's32[2]{0}', space=sflag, size = 0x8, scoped, tag = 'scoped memory for tpu_custom_call.1']
    #allocation4 [shape = 's32[2]{0}', space=sflag, size = 0x8, scoped, tag = 'scoped memory for tpu_custom_call.1']
    #allocation5 [shape = 'u8[8192]{0}', space=vmem, size = 0x2000, scoped, tag = 'input window, operand 1']
    #allocation6 [shape = 's32[2]{0}', space=sflag, size = 0x8, scoped, tag = 'scoped memory for tpu_custom_call.1']
    #allocation7 [shape = 'u8[32768]{0}', space=vmem, size = 0x8000, scoped, tag = 'output window, operand 0']
    %7 = vsyncpa [#allocation3], 0
    %s8 = scalar_lea.sflag [#allocation3], 1
    %9 = vsyncpa %s8, 0
    %10 = vsyncpa [#allocation6], 0
    %s11 = scalar_lea.sflag [#allocation6], 1
    %12 = vsyncpa %s11, 0
    %13 = vsyncpa [#allocation4], 0
    %s14 = scalar_lea.sflag [#allocation4], 1
    %15 = vsyncpa %s14, 0
    loop: start=0, step=1, limit=4
    $region2: #{tpu_custom_call.1} parent=1 // loop_pre_header
      _
    $region3: #{tpu_custom_call.1} parent=1 // loop_header
      %s17 = sphi 0, %s21
      %p18 = scmp.ge.s32.totalorder %s17, 4
      %s27 = sphi 0, %s29
      %s30 = sphi 0, %s27
      %s31 = sphi 0, %s30
      %s47 = sphi 0, %s31
      %s53 = sphi 0, %s55
      %s56 = sphi 0, %s53
      %s57 = sphi 0, %s56
      %s73 = sphi 0, %s57
      %s79 = sphi 0, %s81
      %s82 = sphi 0, %s79
      %s83 = sphi 0, %s82
      %s99 = sphi 0, %s83
    $region4: #{tpu_custom_call.1} parent=1 // loop_header_branch
      %20 = sbr.rel (%p18) target = $region8
    $region5: #{tpu_custom_call.1} parent=1 // loop_body
      %s22 = ssub.s32 %s17, 1
      %s23 = ssub.s32 %s17, 2
      %s24 = sadd.s32 %s17, 1
      %s25 = ssub.s32 %s17, %s24
      %p26 = scmp.eq.s32.totalorder %s25, 0
      %s28 = sadd.s32 %s27, 1
      %s29 = scalar_select %p26, %s27, %s28
      %p32 = pneg %p26
      %p33 = scmp.eq.s32.totalorder %s17, 1
      %p34 = por %p32, %p33
      %p35 = scmp.ne.s32.totalorder %s27, %s30
      %p36 = scmp.eq.s32.totalorder %s17, 0
      %p37 = por %p35, %p36
      %p38 = scmp.ne.s32.totalorder %s27, %s30
      %p39 = scmp.eq.s32.totalorder %s22, 1
      %p40 = por %p38, %p39
      %p41 = scmp.ne.s32.totalorder %s30, %s31
      %p42 = scmp.eq.s32.totalorder %s22, 0
      %p43 = por %p41, %p42
      %p44 = scmp.ne.s32.totalorder %s30, %s31
      %p45 = scmp.eq.s32.totalorder %s23, 1
      %p46 = por %p44, %p45
      %p48 = scmp.ne.s32.totalorder %s31, %s47
      %p49 = scmp.eq.s32.totalorder %s23, 0
      %p50 = por %p48, %p49
      %s51 = ssub.s32 %s17, %s24
      %p52 = scmp.eq.s32.totalorder %s51, 0
      %s54 = sadd.s32 %s53, 1
      %s55 = scalar_select %p52, %s53, %s54
      %p58 = pneg %p52
      %p59 = scmp.eq.s32.totalorder %s17, 1
      %p60 = por %p58, %p59
      %p61 = scmp.ne.s32.totalorder %s53, %s56
      %p62 = scmp.eq.s32.totalorder %s17, 0
      %p63 = por %p61, %p62
      %p64 = scmp.ne.s32.totalorder %s53, %s56
      %p65 = scmp.eq.s32.totalorder %s22, 1
      %p66 = por %p64, %p65
      %p67 = scmp.ne.s32.totalorder %s56, %s57
      %p68 = scmp.eq.s32.totalorder %s22, 0
      %p69 = por %p67, %p68
      %p70 = scmp.ne.s32.totalorder %s56, %s57
      %p71 = scmp.eq.s32.totalorder %s23, 1
      %p72 = por %p70, %p71
      %p74 = scmp.ne.s32.totalorder %s57, %s73
      %p75 = scmp.eq.s32.totalorder %s23, 0
      %p76 = por %p74, %p75
      %s77 = ssub.s32 %s17, %s24
      %p78 = scmp.eq.s32.totalorder %s77, 0
      %s80 = sadd.s32 %s79, 1
      %s81 = scalar_select %p78, %s79, %s80
      %p84 = pneg %p78
      %p85 = scmp.eq.s32.totalorder %s17, 1
      %p86 = por %p84, %p85
      %p87 = scmp.ne.s32.totalorder %s79, %s82
      %p88 = scmp.eq.s32.totalorder %s17, 0
      %p89 = por %p87, %p88
      %p90 = scmp.ne.s32.totalorder %s79, %s82
      %p91 = scmp.eq.s32.totalorder %s22, 1
      %p92 = por %p90, %p91
      %p93 = scmp.ne.s32.totalorder %s82, %s83
      %p94 = scmp.eq.s32.totalorder %s22, 0
      %p95 = por %p93, %p94
      %p96 = scmp.ne.s32.totalorder %s82, %s83
      %p97 = scmp.eq.s32.totalorder %s23, 1
      %p98 = por %p96, %p97
      %p100 = scmp.ne.s32.totalorder %s83, %s99
      %p101 = scmp.eq.s32.totalorder %s23, 0
      %p102 = por %p100, %p101
      %p103 = scmp.le.s32.totalorder 1, %s17
      %p104 = scmp.lt.s32.totalorder %s17, 3
      %p105 = pnand %p103, %p104
      %p106 = pneg %p105
      // Predicated region
      $region9: #{tpu_custom_call.1} parent=5 // pred_check
        _
      $region10: #{tpu_custom_call.1} parent=5 // pred_check_branch
        %108 = sbr.rel (%p105) target = $region12
      $region11: #{tpu_custom_call.1} parent=5 // pred_region
        %s109 = ssub.s32 %s17, 1
      $region12: #{tpu_custom_call.1} parent=5 // pred_fallthru
        _
      %p110 = scmp.lt.s32.totalorder %s17, 2
      // Predicated region
      $region13: #{tpu_custom_call.1} parent=5 // pred_check
        %p111 = pneg %p110
      $region14: #{tpu_custom_call.1} parent=5 // pred_check_branch
        %113 = sbr.rel (%p111) target = $region16
      $region15: #{tpu_custom_call.1} parent=5 // pred_region
        // Predicated region
        $region17: #{tpu_custom_call.1} parent=15 // pred_check
          %p114 = pneg %p37
        $region18: #{tpu_custom_call.1} parent=15 // pred_check_branch
          %116 = sbr.rel (%p114) target = $region20
        $region19: #{tpu_custom_call.1} parent=15 // pred_region
          %s117 = sand.u32 %s27, 1
          %s118 = scalar_lea.sflag [#allocation3], %s117
          %s119 = sand.u32 %s27, 1
          %s120 = smul.addr %s119, 32
          %s121 = scalar_lea.vmem [#allocation2], %s120
          %123 = vsyncadd %s118, 0
          %s124 = smul.addr %s17, 4
          %s125 = smul.addr %s124, 8
          %s126 = scalar_lea.hbm %s0, %s125
          %s128 = sshll.u32 %s126, 4
          %s129 = int_to_ptr.hbm [resolvable:$true] %s128
          %s130 = sshll.u32 %s121, 4
          %s131 = int_to_ptr.vmem [resolvable:$true] %s130
          %133 = dma.hbm_to_vmem [thread:$0]  %s129, 512, %s131, %s118
        $region20: #{tpu_custom_call.1} parent=15 // pred_fallthru
          _
        // Predicated region
        $region21: #{tpu_custom_call.1} parent=15 // pred_check
          %p134 = pneg %p63
        $region22: #{tpu_custom_call.1} parent=15 // pred_check_branch
          %136 = sbr.rel (%p134) target = $region24
        $region23: #{tpu_custom_call.1} parent=15 // pred_region
          %s137 = sand.u32 %s53, 1
          %s138 = scalar_lea.sflag [#allocation6], %s137
          %s139 = sand.u32 %s53, 1
          %s140 = smul.addr %s139, 8
          %s141 = scalar_lea.vmem [#allocation5], %s140
          %143 = vsyncadd %s138, 0
          %s144 = smul.addr %s17, 8
          %s145 = scalar_lea.hbm %s1, %s144
          %s147 = sshll.u32 %s145, 4
          %s148 = int_to_ptr.hbm [resolvable:$true] %s147
          %s149 = sshll.u32 %s141, 4
          %s150 = int_to_ptr.vmem [resolvable:$true] %s149
          %152 = dma.hbm_to_vmem [thread:$0]  %s148, 128, %s150, %s138
        $region24: #{tpu_custom_call.1} parent=15 // pred_fallthru
          _
      $region16: #{tpu_custom_call.1} parent=5 // pred_fallthru
        _
      %p153 = scmp.le.s32.totalorder 1, %s17
      %p154 = scmp.lt.s32.totalorder %s17, 3
      %p155 = pnand %p153, %p154
      %p156 = pneg %p155
      // Predicated region
      $region25: #{tpu_custom_call.1} parent=5 // pred_check
        _
      $region26: #{tpu_custom_call.1} parent=5 // pred_check_branch
        %158 = sbr.rel (%p155) target = $region28
      $region27: #{tpu_custom_call.1} parent=5 // pred_region
        %s159 = ssub.s32 %s17, 1
        %s160 = sand.u32 %s30, 1
        %s161 = scalar_lea.sflag [#allocation3], %s160
        %s162 = sand.u32 %s30, 1
        %s163 = smul.addr %s162, 32
        %s164 = scalar_lea.vmem [#allocation2], %s163
        // Predicated region
        $region29: #{tpu_custom_call.1} parent=27 // pred_check
          %p165 = pneg %p43
        $region30: #{tpu_custom_call.1} parent=27 // pred_check_branch
          %167 = sbr.rel (%p165) target = $region32
        $region31: #{tpu_custom_call.1} parent=27 // pred_region
          %169 = dma.done %s161, 512
        $region32: #{tpu_custom_call.1} parent=27 // pred_fallthru
          _
        %s170 = sand.u32 %s56, 1
        %s171 = scalar_lea.sflag [#allocation6], %s170
        %s172 = sand.u32 %s56, 1
        %s173 = smul.addr %s172, 8
        %s174 = scalar_lea.vmem [#allocation5], %s173
        // Predicated region
        $region33: #{tpu_custom_call.1} parent=27 // pred_check
          %p175 = pneg %p69
        $region34: #{tpu_custom_call.1} parent=27 // pred_check_branch
          %177 = sbr.rel (%p175) target = $region36
        $region35: #{tpu_custom_call.1} parent=27 // pred_region
          %179 = dma.done %s171, 128
        $region36: #{tpu_custom_call.1} parent=27 // pred_fallthru
          _
        %s180 = sand.u32 %s30, 1
        %s181 = scalar_lea.sflag [#allocation3], %s180
        %s182 = sand.u32 %s30, 1
        %s183 = smul.addr %s182, 32
        %s184 = scalar_lea.vmem [#allocation2], %s183
        %p185 = pneg %p43
        %p186 = pneg %p40
        %s187 = sand.u32 %s56, 1
        %s188 = scalar_lea.sflag [#allocation6], %s187
        %s189 = sand.u32 %s56, 1
        %s190 = smul.addr %s189, 8
        %s191 = scalar_lea.vmem [#allocation5], %s190
        %p192 = pneg %p69
        %p193 = pneg %p66
        %p194 = pneg %p95
        %p195 = pneg %p92
        %s196 = sand.u32 %s82, 1
        %s197 = scalar_lea.sflag [#allocation4], %s196
        %s198 = sand.u32 %s82, 1
        %s199 = smul.addr %s198, 32
        %s200 = scalar_lea.vmem [#allocation7], %s199
        %v201 = vld [vmem:[%s174] sm:$0xff]
        %v202 = vld [vmem:[%s164] sm:$0xff]
        %v203 = vld [vmem:[%s164 + $0x8] sm:$0xff]
        %v204 = vld [vmem:[%s164 + $0x10] sm:$0xff]
        %v205 = vld [vmem:[%s164 + $0x18] sm:$0xff]
        %v206 = vadd.f32 %v202, %v201
        %v207 = vadd.f32 %v203, %v201
        %v208 = vadd.f32 %v204, %v201
        %v209 = vadd.f32 %v205, %v201
        %210 = vst [vmem:[%s200] sm:$0xff] %v206
        %211 = vst [vmem:[%s200 + $0x8] sm:$0xff] %v207
        %212 = vst [vmem:[%s200 + $0x10] sm:$0xff] %v208
        %213 = vst [vmem:[%s200 + $0x18] sm:$0xff] %v209
        %s214 = sand.u32 %s82, 1
        %s215 = scalar_lea.sflag [#allocation4], %s214
        %s216 = sand.u32 %s82, 1
        %s217 = smul.addr %s216, 32
        %s218 = scalar_lea.vmem [#allocation7], %s217
        // Predicated region
        $region37: #{tpu_custom_call.1} parent=27 // pred_check
          %p219 = pneg %p92
        $region38: #{tpu_custom_call.1} parent=27 // pred_check_branch
          %221 = sbr.rel (%p219) target = $region40
        $region39: #{tpu_custom_call.1} parent=27 // pred_region
          %223 = vsyncadd %s215, 0
          %s224 = smul.addr %s22, 4
          %s225 = smul.addr %s224, 8
          %s226 = scalar_lea.hbm %s2, %s225
          %s228 = sshll.u32 %s218, 4
          %s229 = int_to_ptr.vmem [resolvable:$true] %s228
          %s230 = sshll.u32 %s226, 4
          %s231 = int_to_ptr.hbm [resolvable:$true] %s230
          %233 = dma.vmem_to_hbm [thread:$0]  %s229, 512, %s231, %s215
        $region40: #{tpu_custom_call.1} parent=27 // pred_fallthru
          _
      $region28: #{tpu_custom_call.1} parent=5 // pred_fallthru
        _
      %p234 = scmp.le.s32.totalorder 2, %s17
      // Predicated region
      $region41: #{tpu_custom_call.1} parent=5 // pred_check
        %p235 = pneg %p234
      $region42: #{tpu_custom_call.1} parent=5 // pred_check_branch
        %237 = sbr.rel (%p235) target = $region44
      $region43: #{tpu_custom_call.1} parent=5 // pred_region
        %s238 = ssub.s32 %s17, 2
        // Predicated region
        $region45: #{tpu_custom_call.1} parent=43 // pred_check
          %p239 = pneg %p98
        $region46: #{tpu_custom_call.1} parent=43 // pred_check_branch
          %241 = sbr.rel (%p239) target = $region48
        $region47: #{tpu_custom_call.1} parent=43 // pred_region
          %s242 = sand.u32 %s83, 1
          %s243 = scalar_lea.sflag [#allocation4], %s242
          %s244 = sand.u32 %s83, 1
          %s245 = smul.addr %s244, 32
          %s246 = scalar_lea.vmem [#allocation7], %s245
          %248 = dma.done %s243, 512
        $region48: #{tpu_custom_call.1} parent=43 // pred_fallthru
          _
      $region44: #{tpu_custom_call.1} parent=5 // pred_fallthru
        _
    $region6: #{tpu_custom_call.1} parent=1 // loop_footer
      %s21 = sadd.s32 1, %s17
    $region7: #{tpu_custom_call.1} parent=1 // loop_footer_branch
      %16 = sbr.rel target = $region3
    $region8: #{tpu_custom_call.1} parent=1 // loop_exit
      _
    %249 = vsyncpa [#allocation3], 1
    %s250 = scalar_lea.sflag [#allocation3], 1
    %251 = vsyncpa %s250, 1
    %252 = vsyncpa [#allocation6], 1
    %s253 = scalar_lea.sflag [#allocation6], 1
    %254 = vsyncpa %s253, 1
    %255 = vsyncpa [#allocation4], 1
    %s256 = scalar_lea.sflag [#allocation4], 1
    %257 = vsyncpa %s256, 1

</llo_original>
